<compile_context>
chip_gen: v7x
topology: tpu7x:2x2x1
jax: 0.10.0
libtpu: 0.0.40
codegen_flags: <defaults>
</compile_context>

<pallas_src>
import numpy as np
import jax
import jax.numpy as jnp
from jax.experimental import pallas as pl
from jax.experimental.pallas import tpu as pltpu


_VPAD = 32             # vocab (26) padded to a power of two / clean lane count
_MAX_TILE_ROWS = 8192  # packed rows per grid step (= 65536 lookups for D=16)


def _round_up(x, m):
    return (x + m - 1) // m * m


def _make_kernel(g, vpad):
    def _embed_kernel(idx_ref, vmod_ref, table2_ref, out_ref, onehot_ref):
        # idx_ref:    (R, G)        int32  G consecutive flat indices per row (streamed)
        # vmod_ref:   (1, VPAD)     int32  [0, 1, ..., VPAD-1]                 (resident)
        # table2_ref: (G*VPAD, G*D) f32    block-diag: [j*VPAD+v, j*D+d] = table[v, d]
        # out_ref:    (R, G*D)      f32    row r = embeddings of flat rows G*r .. G*r+G-1
        # onehot_ref: (R, G*VPAD)   f32    VMEM scratch (fully overwritten every step)
        vmod = vmod_ref[...]                                       # (1, VPAD)
        for j in range(g):                                         # VPU-side expansion
            col = idx_ref[:, j:j + 1]                              # (R, 1) int32
            onehot_ref[:, j * vpad:(j + 1) * vpad] = (
                (col == vmod).astype(jnp.float32))                 # (R, VPAD)
        # Single full-lane-width MXU matmul -> dense, unmasked output store.
        out_ref[...] = jnp.dot(onehot_ref[...], table2_ref[...],
                               preferred_element_type=jnp.float32)
    return _embed_kernel


def letter_encoder_forward(letter_idx, embed_table, *, max_tile_rows=_MAX_TILE_ROWS):
    """Pallas equivalent of LetterEncoder.forward.

    letter_idx:  integer array of arbitrary shape, values in [0, 26)
    embed_table: (26, letter_embed_dim) float array (nn.Embedding weight)
    returns:     (*letter_idx.shape, letter_embed_dim), dtype of embed_table
    """
    idx_shape = letter_idx.shape
    n = int(np.prod(idx_shape)) if idx_shape else 1
    v, d = embed_table.shape
    assert v <= _VPAD, "kernel assumes vocab <= 32"
    g = max(1, 128 // d)                       # lookups packed per row (8 for D=16)
    vpad = _VPAD

    table = embed_table.astype(jnp.float32)
    # Tiny constants. vmod is a baked numpy constant; table2 is a few fused XLA ops.
    vmod = jnp.asarray(np.arange(vpad, dtype=np.int32)[None, :])            # (1, VPAD)
    table_pad = jnp.pad(table, ((0, vpad - v), (0, 0)))                     # (VPAD, D)
    table2 = jnp.kron(np.eye(g, dtype=np.float32), table_pad)               # (G*VPAD, G*D)

    # Flatten; pad only to a multiple of G (ragged last grid block handled by Pallas).
    rows = -(-n // g)
    n_pad = rows * g
    ids = jnp.ravel(letter_idx).astype(jnp.int32)
    if n_pad != n:
        ids = jnp.pad(ids, (0, n_pad - n))     # padded slots read table[0]; sliced below
    idx2d = ids.reshape(rows, g)

    # Tile choice: big enough to amortize per-step cost, >=2 blocks when there is
    # enough work (so the "parallel" axis shards across both TensorCores on v7x).
    if rows <= 8:
        tile_r = rows                          # single tiny block == full dim
    else:
        tile_r = min(max_tile_rows, _round_up((rows + 1) // 2, 8))
    grid = (pl.cdiv(rows, tile_r),)

    # VMEM budget: double-buffered idx/out blocks + resident constants + one-hot scratch.
    est_vmem = (2 * tile_r * g * 4 + 2 * tile_r * g * d * 4
                + tile_r * g * vpad * 4 + 2 * g * vpad * g * d * 4)
    vmem_limit = int(min(56 * 2**20, max(est_vmem + 16 * 2**20, 16 * 2**20)))

    cost = pl.CostEstimate(
        flops=2 * rows * (g * vpad) * (g * d),
        transcendentals=0,
        bytes_accessed=4 * rows * g + 4 * rows * g * d + 4 * g * vpad * g * d + 4 * vpad,
    )

    out_packed = pl.pallas_call(
        _make_kernel(g, vpad),
        out_shape=jax.ShapeDtypeStruct((rows, g * d), jnp.float32),
        grid=grid,
        in_specs=[
            pl.BlockSpec((tile_r, g), lambda i: (i, 0)),           # streamed indices
            pl.BlockSpec((1, vpad), lambda i: (0, 0)),             # resident constant
            pl.BlockSpec((g * vpad, g * d), lambda i: (0, 0)),     # resident table
        ],
        out_specs=pl.BlockSpec((tile_r, g * d), lambda i: (i, 0)),
        scratch_shapes=[pltpu.VMEM((tile_r, g * vpad), jnp.float32)],
        compiler_params=pltpu.CompilerParams(
            dimension_semantics=("parallel",),
            vmem_limit_bytes=vmem_limit,
        ),
        cost_estimate=cost,
    )(idx2d, vmod, table2)

    out = out_packed.reshape(rows * g, d)      # free row-major reinterpretation
    if n_pad != n:
        out = out[:n]
    return out.reshape(*idx_shape, d).astype(embed_table.dtype)


if __name__ == "__main__":
    letter_embed_dim = 16
    batch, seq = 2, 8

    key = jax.random.PRNGKey(0)
    k_w, k1, k2, k3 = jax.random.split(key, 4)

    # Deterministic parameter init (nn.Embedding default: N(0, 1)).
    embed_table = jax.random.normal(k_w, (26, letter_embed_dim), dtype=jnp.float32)
    fwd = jax.jit(letter_encoder_forward)

    # (2, 8): single-block path.
    letter_idx = jax.random.randint(k1, (batch, seq), minval=0, maxval=26)
    out = jax.block_until_ready(fwd(letter_idx, embed_table))
    ref = jnp.take(embed_table, letter_idx, axis=0)
    assert out.shape == (batch, seq, letter_embed_dim), out.shape
    np.testing.assert_allclose(np.asarray(out), np.asarray(ref), rtol=1e-6, atol=1e-6)

    # (3, 5): flat count 15 exercises the pad-to-multiple-of-G path.
    letter_idx2 = jax.random.randint(k2, (3, 5), minval=0, maxval=26)
    out2 = jax.block_until_ready(fwd(letter_idx2, embed_table))
    ref2 = jnp.take(embed_table, letter_idx2, axis=0)
    assert out2.shape == (3, 5, letter_embed_dim), out2.shape
    np.testing.assert_allclose(np.asarray(out2), np.asarray(ref2), rtol=1e-6, atol=1e-6)

    # (64, 37): multi-block grid (2 steps) with a ragged last block.
    letter_idx3 = jax.random.randint(k3, (64, 37), minval=0, maxval=26)
    out3 = jax.block_until_ready(fwd(letter_idx3, embed_table))
    ref3 = jnp.take(embed_table, letter_idx3, axis=0)
    assert out3.shape == (64, 37, letter_embed_dim), out3.shape
    np.testing.assert_allclose(np.asarray(out3), np.asarray(ref3), rtol=1e-6, atol=1e-6)

    print("KERNEL_OK")
</pallas_src>

<mosaic_0001>
module attributes {stable_mosaic.version = 11 : i64} {
  func.func @_embed_kernel(%arg0: i32, %arg1: memref<2x8xi32, #tpu.memory_space<vmem>>, %arg2: memref<1x32xi32, #tpu.memory_space<vmem>>, %arg3: memref<256x128xf32, #tpu.memory_space<vmem>>, %arg4: memref<2x128xf32, #tpu.memory_space<vmem>>, %arg5: memref<2x256xf32, #tpu.memory_space<vmem>>) attributes {dimension_semantics = [#tpu.dimension_semantics<parallel>], iteration_bounds = array<i64: 1>, scalar_prefetch = 0 : i64, scratch_operands = 1 : i64, tpu.core_type = #tpu.core_type<tc>, window_params = [{transform_indices = @transform_0, window_bounds = array<i64: 2, 8>}, {pipeline_mode = #tpu.pipeline_mode<synchronous>, transform_indices = @transform_1, window_bounds = array<i64: 1, 32>}, {pipeline_mode = #tpu.pipeline_mode<synchronous>, transform_indices = @transform_2, window_bounds = array<i64: 256, 128>}, {transform_indices = @transform_3, window_bounds = array<i64: 2, 128>}]} {
    %c0 = arith.constant 0 : index
    %c0_0 = arith.constant 0 : index
    %0 = vector.load %arg2[%c0, %c0_0] : memref<1x32xi32, #tpu.memory_space<vmem>>, vector<1x32xi32>
    %c0_1 = arith.constant 0 : index
    %c0_2 = arith.constant 0 : index
    %1 = vector.load %arg1[%c0_1, %c0_2] : memref<2x8xi32, #tpu.memory_space<vmem>>, vector<2x1xi32>
    %2 = vector.broadcast %1 : vector<2x1xi32> to vector<2x32xi32>
    %3 = vector.broadcast %0 : vector<1x32xi32> to vector<2x32xi32>
    %4 = arith.cmpi eq, %2, %3 : vector<2x32xi32>
    %5 = arith.extui %4 : vector<2x32xi1> to vector<2x32xi32>
    %6 = arith.sitofp %5 : vector<2x32xi32> to vector<2x32xf32>
    %c0_3 = arith.constant 0 : index
    %c0_4 = arith.constant 0 : index
    %7 = vector.load %arg5[%c0_3, %c0_4] : memref<2x256xf32, #tpu.memory_space<vmem>>, vector<2x32xf32>
    tpu.vector_store %arg5[%c0_3, %c0_4], %6 {strides = array<i32>} : memref<2x256xf32, #tpu.memory_space<vmem>>, vector<2x32xf32>,
    %c0_5 = arith.constant 0 : index
    %c1 = arith.constant 1 : index
    %8 = vector.load %arg1[%c0_5, %c1] : memref<2x8xi32, #tpu.memory_space<vmem>>, vector<2x1xi32>
    %9 = vector.broadcast %8 : vector<2x1xi32> to vector<2x32xi32>
    %10 = vector.broadcast %0 : vector<1x32xi32> to vector<2x32xi32>
    %11 = arith.cmpi eq, %9, %10 : vector<2x32xi32>
    %12 = arith.extui %11 : vector<2x32xi1> to vector<2x32xi32>
    %13 = arith.sitofp %12 : vector<2x32xi32> to vector<2x32xf32>
    %c0_6 = arith.constant 0 : index
    %c32 = arith.constant 32 : index
    %14 = vector.load %arg5[%c0_6, %c32] : memref<2x256xf32, #tpu.memory_space<vmem>>, vector<2x32xf32>
    tpu.vector_store %arg5[%c0_6, %c32], %13 {strides = array<i32>} : memref<2x256xf32, #tpu.memory_space<vmem>>, vector<2x32xf32>,
    %c0_7 = arith.constant 0 : index
    %c2 = arith.constant 2 : index
    %15 = vector.load %arg1[%c0_7, %c2] : memref<2x8xi32, #tpu.memory_space<vmem>>, vector<2x1xi32>
    %16 = vector.broadcast %15 : vector<2x1xi32> to vector<2x32xi32>
    %17 = vector.broadcast %0 : vector<1x32xi32> to vector<2x32xi32>
    %18 = arith.cmpi eq, %16, %17 : vector<2x32xi32>
    %19 = arith.extui %18 : vector<2x32xi1> to vector<2x32xi32>
    %20 = arith.sitofp %19 : vector<2x32xi32> to vector<2x32xf32>
    %c0_8 = arith.constant 0 : index
    %c64 = arith.constant 64 : index
    %21 = vector.load %arg5[%c0_8, %c64] : memref<2x256xf32, #tpu.memory_space<vmem>>, vector<2x32xf32>
    tpu.vector_store %arg5[%c0_8, %c64], %20 {strides = array<i32>} : memref<2x256xf32, #tpu.memory_space<vmem>>, vector<2x32xf32>,
    %c0_9 = arith.constant 0 : index
    %c3 = arith.constant 3 : index
    %22 = vector.load %arg1[%c0_9, %c3] : memref<2x8xi32, #tpu.memory_space<vmem>>, vector<2x1xi32>
    %23 = vector.broadcast %22 : vector<2x1xi32> to vector<2x32xi32>
    %24 = vector.broadcast %0 : vector<1x32xi32> to vector<2x32xi32>
    %25 = arith.cmpi eq, %23, %24 : vector<2x32xi32>
    %26 = arith.extui %25 : vector<2x32xi1> to vector<2x32xi32>
    %27 = arith.sitofp %26 : vector<2x32xi32> to vector<2x32xf32>
    %c0_10 = arith.constant 0 : index
    %c96 = arith.constant 96 : index
    %28 = vector.load %arg5[%c0_10, %c96] : memref<2x256xf32, #tpu.memory_space<vmem>>, vector<2x32xf32>
    tpu.vector_store %arg5[%c0_10, %c96], %27 {strides = array<i32>} : memref<2x256xf32, #tpu.memory_space<vmem>>, vector<2x32xf32>,
    %c0_11 = arith.constant 0 : index
    %c4 = arith.constant 4 : index
    %29 = vector.load %arg1[%c0_11, %c4] : memref<2x8xi32, #tpu.memory_space<vmem>>, vector<2x1xi32>
    %30 = vector.broadcast %29 : vector<2x1xi32> to vector<2x32xi32>
    %31 = vector.broadcast %0 : vector<1x32xi32> to vector<2x32xi32>
    %32 = arith.cmpi eq, %30, %31 : vector<2x32xi32>
    %33 = arith.extui %32 : vector<2x32xi1> to vector<2x32xi32>
    %34 = arith.sitofp %33 : vector<2x32xi32> to vector<2x32xf32>
    %c0_12 = arith.constant 0 : index
    %c128 = arith.constant 128 : index
    %35 = vector.load %arg5[%c0_12, %c128] : memref<2x256xf32, #tpu.memory_space<vmem>>, vector<2x32xf32>
    tpu.vector_store %arg5[%c0_12, %c128], %34 {strides = array<i32>} : memref<2x256xf32, #tpu.memory_space<vmem>>, vector<2x32xf32>,
    %c0_13 = arith.constant 0 : index
    %c5 = arith.constant 5 : index
    %36 = vector.load %arg1[%c0_13, %c5] : memref<2x8xi32, #tpu.memory_space<vmem>>, vector<2x1xi32>
    %37 = vector.broadcast %36 : vector<2x1xi32> to vector<2x32xi32>
    %38 = vector.broadcast %0 : vector<1x32xi32> to vector<2x32xi32>
    %39 = arith.cmpi eq, %37, %38 : vector<2x32xi32>
    %40 = arith.extui %39 : vector<2x32xi1> to vector<2x32xi32>
    %41 = arith.sitofp %40 : vector<2x32xi32> to vector<2x32xf32>
    %c0_14 = arith.constant 0 : index
    %c160 = arith.constant 160 : index
    %42 = vector.load %arg5[%c0_14, %c160] : memref<2x256xf32, #tpu.memory_space<vmem>>, vector<2x32xf32>
    tpu.vector_store %arg5[%c0_14, %c160], %41 {strides = array<i32>} : memref<2x256xf32, #tpu.memory_space<vmem>>, vector<2x32xf32>,
    %c0_15 = arith.constant 0 : index
    %c6 = arith.constant 6 : index
    %43 = vector.load %arg1[%c0_15, %c6] : memref<2x8xi32, #tpu.memory_space<vmem>>, vector<2x1xi32>
    %44 = vector.broadcast %43 : vector<2x1xi32> to vector<2x32xi32>
    %45 = vector.broadcast %0 : vector<1x32xi32> to vector<2x32xi32>
    %46 = arith.cmpi eq, %44, %45 : vector<2x32xi32>
    %47 = arith.extui %46 : vector<2x32xi1> to vector<2x32xi32>
    %48 = arith.sitofp %47 : vector<2x32xi32> to vector<2x32xf32>
    %c0_16 = arith.constant 0 : index
    %c192 = arith.constant 192 : index
    %49 = vector.load %arg5[%c0_16, %c192] : memref<2x256xf32, #tpu.memory_space<vmem>>, vector<2x32xf32>
    tpu.vector_store %arg5[%c0_16, %c192], %48 {strides = array<i32>} : memref<2x256xf32, #tpu.memory_space<vmem>>, vector<2x32xf32>,
    %c0_17 = arith.constant 0 : index
    %c7 = arith.constant 7 : index
    %50 = vector.load %arg1[%c0_17, %c7] : memref<2x8xi32, #tpu.memory_space<vmem>>, vector<2x1xi32>
    %51 = vector.broadcast %50 : vector<2x1xi32> to vector<2x32xi32>
    %52 = vector.broadcast %0 : vector<1x32xi32> to vector<2x32xi32>
    %53 = arith.cmpi eq, %51, %52 : vector<2x32xi32>
    %54 = arith.extui %53 : vector<2x32xi1> to vector<2x32xi32>
    %55 = arith.sitofp %54 : vector<2x32xi32> to vector<2x32xf32>
    %c0_18 = arith.constant 0 : index
    %c224 = arith.constant 224 : index
    %56 = vector.load %arg5[%c0_18, %c224] : memref<2x256xf32, #tpu.memory_space<vmem>>, vector<2x32xf32>
    tpu.vector_store %arg5[%c0_18, %c224], %55 {strides = array<i32>} : memref<2x256xf32, #tpu.memory_space<vmem>>, vector<2x32xf32>,
    %c0_19 = arith.constant 0 : index
    %c0_20 = arith.constant 0 : index
    %57 = vector.load %arg5[%c0_19, %c0_20] : memref<2x256xf32, #tpu.memory_space<vmem>>, vector<2x256xf32>
    %c0_21 = arith.constant 0 : index
    %c0_22 = arith.constant 0 : index
    %58 = vector.load %arg3[%c0_21, %c0_22] : memref<256x128xf32, #tpu.memory_space<vmem>>, vector<256x128xf32>
    %cst = arith.constant dense<0.000000e+00> : vector<2x128xf32>
    %59 = tpu.matmul %57, %58, %cst {dimension_numbers = #tpu.dot_dimension_numbers<[1], [0], [0], [1], [0, 0, 1, 1], [], []>} : vector<2x256xf32>, vector<256x128xf32>, vector<2x128xf32> -> vector<2x128xf32>
    %c0_23 = arith.constant 0 : index
    %c0_24 = arith.constant 0 : index
    %60 = vector.load %arg4[%c0_23, %c0_24] : memref<2x128xf32, #tpu.memory_space<vmem>>, vector<2x128xf32>
    tpu.vector_store %arg4[%c0_23, %c0_24], %59 {strides = array<i32>} : memref<2x128xf32, #tpu.memory_space<vmem>>, vector<2x128xf32>,
    return
  }
  func.func @transform_0(%arg0: i32) -> (i32, i32) {
    %c0_i32 = arith.constant 0 : i32
    %c0_i32_0 = arith.constant 0 : i32
    return %arg0, %c0_i32 : i32, i32
  }
  func.func @transform_1(%arg0: i32) -> (i32, i32) {
    %c0_i32 = arith.constant 0 : i32
    %c0_i32_0 = arith.constant 0 : i32
    %c0_i32_1 = arith.constant 0 : i32
    return %c0_i32, %c0_i32_0 : i32, i32
  }
  func.func @transform_2(%arg0: i32) -> (i32, i32) {
    %c0_i32 = arith.constant 0 : i32
    %c0_i32_0 = arith.constant 0 : i32
    %c0_i32_1 = arith.constant 0 : i32
    return %c0_i32, %c0_i32_0 : i32, i32
  }
  func.func @transform_3(%arg0: i32) -> (i32, i32) {
    %c0_i32 = arith.constant 0 : i32
    %c0_i32_0 = arith.constant 0 : i32
    return %arg0, %c0_i32 : i32, i32
  }
}

</mosaic_0001>

<llo_original>
// kernel: letter_encoder_forward.1
$region0: #{letter_encoder_forward.1}
  #allocation0 [shape = 'u32[]', space=smem, size = 0x4, offset = 0x4, fixed_abs, tag = 'smem constant byte address 0x4 - core index']
  #allocation1 [shape = 'u32[144,128]{1,0:T(1,128)}', space=vmem, size = 0x12000, scoped, tag = 'internal scratch']
  #allocation2 [shape = 'f32[2,256]{1,0:T(2,128)}', space=vmem, size = 0x800, scoped, tag = 'scratch operand']
  %s0 = inlined_call_operand.vmem [shape: s32[2,8], index: 0, kind: input, shape index: {}]
  %s1 = inlined_call_operand.vmem [shape: s32[1,32], index: 1, kind: input, shape index: {}]
  %s2 = inlined_call_operand.vmem [shape: f32[256,128], index: 2, kind: input, shape index: {}]
  %s3 = inlined_call_operand.vmem [shape: f32[2,128], index: 3, kind: output, shape index: {}]
  %s4 = sld [smem:[#allocation0]]
  $region22: #{letter_encoder_forward.1} parent=0
    _
  %s6 = ssub.s32 1, %s4
  %s7 = scalar_select 0, %s6, %s4
  // Predicated region
  $region2: #{letter_encoder_forward.1} parent=0 // pred_check
    _
  $region3: #{letter_encoder_forward.1} parent=0 // pred_check_branch
    %9 = sbr.rel (0) target = $region5
  $region4: #{letter_encoder_forward.1} parent=0 // pred_region
    _
  $region5: #{letter_encoder_forward.1} parent=0 // pred_fallthru
    _
  // Predicated region
  $region6: #{letter_encoder_forward.1} parent=0 // pred_check
    _
  $region7: #{letter_encoder_forward.1} parent=0 // pred_check_branch
    %11 = sbr.rel (0) target = $region9
  $region8: #{letter_encoder_forward.1} parent=0 // pred_region
    _
  $region9: #{letter_encoder_forward.1} parent=0 // pred_fallthru
    _
  // Predicated region
  $region10: #{letter_encoder_forward.1} parent=0 // pred_check
    _
  $region11: #{letter_encoder_forward.1} parent=0 // pred_check_branch
    %13 = sbr.rel (0) target = $region13
  $region12: #{letter_encoder_forward.1} parent=0 // pred_region
    _
  $region13: #{letter_encoder_forward.1} parent=0 // pred_fallthru
    _
  %v14 = vld [vmem:[%s1] sm:$0x1]
  %v15 = vld [vmem:[%s0] sm:$0x3]
  %16 = vset.pattern.permute.xlu0 0
  %17 = vperm.xlu0 %16, %v15
  %v18 = vpop.permute.xlu0 %17
  %v19 = vlaneseq
  %v20 = vshrl.u32 %v19, 7
  %v21 = vsub.s32 0, %v20
  %v22 = vrot.slane %v14, %v21
  %vm23 = vcmp.eq.s32.totalorder %v18, %v22
  %v24 = vsel %vm23, 1, 0
  %v25 = vcvt.s32.f32 %v24
  %vm26 = vcmask 254976
  %27 = vst.msk [vmem:[#allocation2] sm:$0x3] %vm26, %v25
  %v28 = vld [vmem:[%s0] sm:$0x3]
  %29 = vset.pattern.permute.xlu0 1
  %30 = vperm.xlu0 %29, %v28
  %v31 = vpop.permute.xlu0 %30
  %vm32 = vcmp.eq.s32.totalorder %v31, %v22
  %v33 = vsel %vm32, 1, 0
  %v34 = vcvt.s32.f32 %v33
  %v37 = vunpack.c.l.s4 1983009808
  %v38 = vunpack.c.0.s8 %v37
  %v39 = vlaneseq
  %v40 = vshrl.u32 %v39, 7
  %v41 = vsub.s32 %v38, %v40
  %v42 = vrot.slane %v34, %v41
  %43 = vrot.lane.b32.xlu0 %v42, 32
  %v44 = vpop.permute.xlu0 %43
  %vm46 = vcmask 517376
  %47 = vst.msk [vmem:[#allocation2] sm:$0x3] %vm46, %v44
  %v48 = vld [vmem:[%s0] sm:$0x3]
  %49 = vset.pattern.permute.xlu0 2
  %50 = vperm.xlu0 %49, %v48
  %v51 = vpop.permute.xlu0 %50
  %vm52 = vcmp.eq.s32.totalorder %v51, %v22
  %v53 = vsel %vm52, 1, 0
  %v54 = vcvt.s32.f32 %v53
  %v57 = vunpack.c.l.s4 1983009808
  %v58 = vunpack.c.0.s8 %v57
  %v59 = vlaneseq
  %v60 = vshrl.u32 %v59, 7
  %v61 = vsub.s32 %v58, %v60
  %v62 = vrot.slane %v54, %v61
  %63 = vrot.lane.b32.xlu0 %v62, 64
  %v64 = vpop.permute.xlu0 %63
  %vm66 = vcmask 779776
  %67 = vst.msk [vmem:[#allocation2] sm:$0x3] %vm66, %v64
  %v68 = vld [vmem:[%s0] sm:$0x3]
  %69 = vset.pattern.permute.xlu0 3
  %70 = vperm.xlu0 %69, %v68
  %v71 = vpop.permute.xlu0 %70
  %vm72 = vcmp.eq.s32.totalorder %v71, %v22
  %v73 = vsel %vm72, 1, 0
  %v74 = vcvt.s32.f32 %v73
  %v77 = vunpack.c.l.s4 1983009808
  %v78 = vunpack.c.0.s8 %v77
  %v79 = vlaneseq
  %v80 = vshrl.u32 %v79, 7
  %v81 = vsub.s32 %v78, %v80
  %v82 = vrot.slane %v74, %v81
  %83 = vrot.lane.b32.xlu0 %v82, 96
  %v84 = vpop.permute.xlu0 %83
  %vm86 = vcmask 1042176
  %87 = vst.msk [vmem:[#allocation2] sm:$0x3] %vm86, %v84
  %v88 = vld [vmem:[%s0] sm:$0x3]
  %89 = vset.pattern.permute.xlu0 4
  %90 = vperm.xlu0 %89, %v88
  %v91 = vpop.permute.xlu0 %90
  %vm92 = vcmp.eq.s32.totalorder %v91, %v22
  %v93 = vsel %vm92, 1, 0
  %v94 = vcvt.s32.f32 %v93
  %95 = vst.msk [vmem:[#allocation2 + $0x2] sm:$0x3] %vm26, %v94
  %v96 = vld [vmem:[%s0] sm:$0x3]
  %97 = vset.pattern.permute.xlu0 5
  %98 = vperm.xlu0 %97, %v96
  %v99 = vpop.permute.xlu0 %98
  %vm100 = vcmp.eq.s32.totalorder %v99, %v22
  %v101 = vsel %vm100, 1, 0
  %v102 = vcvt.s32.f32 %v101
  %v105 = vunpack.c.l.s4 1983009808
  %v106 = vunpack.c.0.s8 %v105
  %v107 = vlaneseq
  %v108 = vshrl.u32 %v107, 7
  %v109 = vsub.s32 %v106, %v108
  %v110 = vrot.slane %v102, %v109
  %111 = vrot.lane.b32.xlu0 %v110, 32
  %v112 = vpop.permute.xlu0 %111
  %114 = vst.msk [vmem:[#allocation2 + $0x2] sm:$0x3] %vm46, %v112
  %v115 = vld [vmem:[%s0] sm:$0x3]
  %116 = vset.pattern.permute.xlu0 6
  %117 = vperm.xlu0 %116, %v115
  %v118 = vpop.permute.xlu0 %117
  %vm119 = vcmp.eq.s32.totalorder %v118, %v22
  %v120 = vsel %vm119, 1, 0
  %v121 = vcvt.s32.f32 %v120
  %v124 = vunpack.c.l.s4 1983009808
  %v125 = vunpack.c.0.s8 %v124
  %v126 = vlaneseq
  %v127 = vshrl.u32 %v126, 7
  %v128 = vsub.s32 %v125, %v127
  %v129 = vrot.slane %v121, %v128
  %130 = vrot.lane.b32.xlu0 %v129, 64
  %v131 = vpop.permute.xlu0 %130
  %133 = vst.msk [vmem:[#allocation2 + $0x2] sm:$0x3] %vm66, %v131
  %v134 = vld [vmem:[%s0] sm:$0x3]
  %135 = vset.pattern.permute.xlu0 7
  %136 = vperm.xlu0 %135, %v134
  %v137 = vpop.permute.xlu0 %136
  %vm138 = vcmp.eq.s32.totalorder %v137, %v22
  %v139 = vsel %vm138, 1, 0
  %v140 = vcvt.s32.f32 %v139
  %v143 = vunpack.c.l.s4 1983009808
  %v144 = vunpack.c.0.s8 %v143
  %v145 = vlaneseq
  %v146 = vshrl.u32 %v145, 7
  %v147 = vsub.s32 %v144, %v146
  %v148 = vrot.slane %v140, %v147
  %149 = vrot.lane.b32.xlu0 %v148, 96
  %v150 = vpop.permute.xlu0 %149
  %152 = vst.msk [vmem:[#allocation2 + $0x2] sm:$0x3] %vm86, %v150
  %v153 = vld [vmem:[#allocation2] sm:$0xf]
  %v154 = vld [vmem:[%s2] sm:$0xff]
  %v155 = vld [vmem:[%s2 + $0x8] sm:$0xff]
  %v156 = vld [vmem:[%s2 + $0x10] sm:$0xff]
  %v157 = vld [vmem:[%s2 + $0x18] sm:$0xff]
  %v158 = vld [vmem:[%s2 + $0x20] sm:$0xff]
  %v159 = vld [vmem:[%s2 + $0x28] sm:$0xff]
  %v160 = vld [vmem:[%s2 + $0x30] sm:$0xff]
  %v161 = vld [vmem:[%s2 + $0x38] sm:$0xff]
  %v162 = vld [vmem:[%s2 + $0x40] sm:$0xff]
  %v163 = vld [vmem:[%s2 + $0x48] sm:$0xff]
  %v164 = vld [vmem:[%s2 + $0x50] sm:$0xff]
  %v165 = vld [vmem:[%s2 + $0x58] sm:$0xff]
  %v166 = vld [vmem:[%s2 + $0x60] sm:$0xff]
  %v167 = vld [vmem:[%s2 + $0x68] sm:$0xff]
  %v168 = vld [vmem:[%s2 + $0x70] sm:$0xff]
  %v169 = vld [vmem:[%s2 + $0x78] sm:$0xff]
  %v170 = vld [vmem:[%s2 + $0x80] sm:$0xff]
  %v171 = vld [vmem:[%s2 + $0x88] sm:$0xff]
  %v172 = vld [vmem:[%s2 + $0x90] sm:$0xff]
  %v173 = vld [vmem:[%s2 + $0x98] sm:$0xff]
  %v174 = vld [vmem:[%s2 + $0xa0] sm:$0xff]
  %v175 = vld [vmem:[%s2 + $0xa8] sm:$0xff]
  %v176 = vld [vmem:[%s2 + $0xb0] sm:$0xff]
  %v177 = vld [vmem:[%s2 + $0xb8] sm:$0xff]
  %v178 = vld [vmem:[%s2 + $0xc0] sm:$0xff]
  %v179 = vld [vmem:[%s2 + $0xc8] sm:$0xff]
  %v180 = vld [vmem:[%s2 + $0xd0] sm:$0xff]
  %v181 = vld [vmem:[%s2 + $0xd8] sm:$0xff]
  %v182 = vld [vmem:[%s2 + $0xe0] sm:$0xff]
  %v183 = vld [vmem:[%s2 + $0xe8] sm:$0xff]
  %v184 = vld [vmem:[%s2 + $0xf0] sm:$0xff]
  %v185 = vld [vmem:[%s2 + $0xf8] sm:$0xff]
  %v188 = vunpack.c.l.s4 1983009808
  %v189 = vunpack.c.0.s8 %v188
  %v190 = vlaneseq
  %v191 = vshrl.u32 %v190, 7
  %v192 = vsub.s32 %v189, %v191
  %v193 = vrot.slane %v153, %v192
  %v194 = vcombine.high %v193, %v193
  %197 = vmatprep.subr.mxu0 0.0
  %198 = vmatpush1.msra.mxu0 %v154
  %199 = vmatprep.subr.mxu0 0.0
  %200 = vmatpush1.msra.mxu0 %v155
  %201 = vmatprep.subr.mxu0 0.0
  %202 = vmatpush1.msra.mxu0 %v156
  %203 = vmatprep.subr.mxu0 0.0
  %204 = vmatpush1.msra.mxu0 %v157
  %205 = vmatprep.subr.mxu0 0.0
  %206 = vmatpush1.msra.mxu0 %v158
  %207 = vmatprep.subr.mxu0 0.0
  %208 = vmatpush1.msra.mxu0 %v159
  %209 = vmatprep.subr.mxu0 0.0
  %210 = vmatpush1.msra.mxu0 %v160
  %211 = vmatprep.subr.mxu0 0.0
  %212 = vmatpush1.msra.mxu0 %v161
  %213 = vmatprep.subr.mxu0 0.0
  %214 = vmatpush1.msra.mxu0 %v162
  %215 = vmatprep.subr.mxu0 0.0
  %216 = vmatpush1.msra.mxu0 %v163
  %217 = vmatprep.subr.mxu0 0.0
  %218 = vmatpush1.msra.mxu0 %v164
  %219 = vmatprep.subr.mxu0 0.0
  %220 = vmatpush1.msra.mxu0 %v165
  %221 = vmatprep.subr.mxu0 0.0
  %222 = vmatpush1.msra.mxu0 %v166
  %223 = vmatprep.subr.mxu0 0.0
  %224 = vmatpush1.msra.mxu0 %v167
  %225 = vmatprep.subr.mxu0 0.0
  %226 = vmatpush1.msra.mxu0 %v168
  %227 = vmatprep.subr.mxu0 0.0
  %228 = vmatpush1.msra.mxu0 %v169
  %229 = vmatprep.subr.mxu0 0.0
  %230 = vmatpush1.msra.mxu0 %v170
  %231 = vmatprep.subr.mxu0 0.0
  %232 = vmatpush1.msra.mxu0 %v171
  %233 = vmatprep.subr.mxu0 0.0
  %234 = vmatpush1.msra.mxu0 %v172
  %235 = vmatprep.subr.mxu0 0.0
  %236 = vmatpush1.msra.mxu0 %v173
  %237 = vmatprep.subr.mxu0 0.0
  %238 = vmatpush1.msra.mxu0 %v174
  %239 = vmatprep.subr.mxu0 0.0
  %240 = vmatpush1.msra.mxu0 %v175
  %241 = vmatprep.subr.mxu0 0.0
  %242 = vmatpush1.msra.mxu0 %v176
  %243 = vmatprep.subr.mxu0 0.0
  %244 = vmatpush1.msra.mxu0 %v177
  %245 = vmatprep.subr.mxu0 0.0
  %246 = vmatpush1.msra.mxu0 %v178
  %247 = vmatprep.subr.mxu0 0.0
  %248 = vmatpush1.msra.mxu0 %v179
  %249 = vmatprep.subr.mxu0 0.0
  %250 = vmatpush1.msra.mxu0 %v180
  %251 = vmatprep.subr.mxu0 0.0
  %252 = vmatpush1.msra.mxu0 %v181
  %253 = vmatprep.subr.mxu0 0.0
  %254 = vmatpush1.msra.mxu0 %v182
  %255 = vmatprep.subr.mxu0 0.0
  %256 = vmatpush1.msra.mxu0 %v183
  %257 = vmatprep.subr.mxu0 0.0
  %258 = vmatpush1.msra.mxu0 %v184
  %259 = vmatprep.subr.mxu0 0.0
  %260 = vmatpush1.msra.mxu0 %v185
  %261 = vmatprep.mubr.f32.mxu0 %v194
  %262 = vmatmul.mubr.f32.gmra.mrb[0].mxu0 %v193
  %v263 = vpop.f32.mrb[0].mxu0
  %v264 = vadd.f32 0.0, %v263
  %v265 = vpop.f32.mrb[0].mxu0
  %266 = vdwg.mxu0
  %267 = vst [vmem:[%s3] sm:$0x3] %v264
  // Predicated region
  $region14: #{letter_encoder_forward.1} parent=0 // pred_check
    _
  $region15: #{letter_encoder_forward.1} parent=0 // pred_check_branch
    %269 = sbr.rel (0) target = $region17
  $region16: #{letter_encoder_forward.1} parent=0 // pred_region
    _
  $region17: #{letter_encoder_forward.1} parent=0 // pred_fallthru
    _
  // Predicated region
  $region18: #{letter_encoder_forward.1} parent=0 // pred_check
    _
  $region19: #{letter_encoder_forward.1} parent=0 // pred_check_branch
    %271 = sbr.rel (0) target = $region21
  $region20: #{letter_encoder_forward.1} parent=0 // pred_region
    _
  $region21: #{letter_encoder_forward.1} parent=0 // pred_fallthru
    _

</llo_original>
